<compile_context>
chip_gen: v5e
topology: v5e:2x2
jax: 0.10.0
libtpu: 0.0.40
codegen_flags: <defaults>
</compile_context>

<pallas_src>
import functools

import jax
import jax.numpy as jnp
from jax import lax
from jax.experimental import pallas as pl
from jax.experimental.pallas import tpu as pltpu


def basic_block_kernel(x_ref, a1_ref, b1_ref, a2_ref, b2_ref, out_ref, smap1_ref, *, H):
    # x_ref   : (M, W*C)  B images worth of rows, W folded into lanes (f32), M = B*H
    # a*_ref  : (3*W*C, W*C) stacked band conv weights (f32 or bf16), BN scale folded in
    # b*_ref  : (1, W*C)      BN bias per (w, c) column (f32)
    # out_ref : (M, W*C)      final activation (f32)
    # smap1_ref: (M, W*C)     uint8 sparsity map of the post-ReLU intermediate
    M, WC = x_ref.shape
    cdt = a1_ref.dtype                       # MXU operand dtype (f32 or bf16)
    x = x_ref[...]                           # (M, W*C) f32

    # Per-image H-boundary masks: rows wrap across images/blocks under the roll,
    # so zero the first/last row of every image explicitly.
    row_in_img = lax.broadcasted_iota(jnp.int32, (M, WC), 0) % H
    is_first = row_in_img == 0
    is_last = row_in_img == (H - 1)
    zeros = jnp.zeros((M, WC), jnp.float32)

    def conv_rows(v, a_ref):
        # Fused 3-tap conv: out[m] = [v[m-1] | v[m] | v[m+1]] @ A  (one K=3*WC matmul).
        # (W-boundary padding and the kw taps are folded into the band matrices;
        #  H/image boundaries handled by the masks above.)
        up = jnp.where(is_first, zeros, pltpu.roll(v, shift=1, axis=0))      # v[m-1]
        dn = jnp.where(is_last, zeros, pltpu.roll(v, shift=M - 1, axis=0))   # v[m+1]
        lhs = jnp.concatenate([up, v, dn], axis=1).astype(cdt)               # one cast / conv
        return jnp.dot(lhs, a_ref[...], preferred_element_type=jnp.float32)

    # conv1 -> bn1 (scale folded into A1) -> relu
    mid = jnp.maximum(conv_rows(x, a1_ref) + b1_ref[...], 0.0)

    # sparsity probe #2 (post-ReLU intermediate) — full (32,128) uint8 tile store;
    # the scalar zero count is reduced in the wrapper.
    smap1_ref[...] = (mid == 0.0).astype(jnp.uint8)

    # conv2 -> bn2 -> + residual -> relu
    out = conv_rows(mid, a2_ref) + b2_ref[...] + x
    out_ref[...] = jnp.maximum(out, 0.0)


def build_band_weights(w_oihw, scale, W, dtype):
    """OIHW 3x3 conv weight + per-output-channel scale -> (3*W*Cin, W*Cout)
    stacked block-banded matrices acting on [x[h-1] | x[h] | x[h+1]] rows.
    Block kh: A[kh][w_in*Cin+ci, w_out*Cout+co] = scale[co]*w[co,ci,kh,w_in-w_out+1]
    when |w_in - w_out| <= 1, else 0 (encodes the W zero-padding)."""
    Cout, Cin, _, _ = w_oihw.shape
    w_t = jnp.transpose(w_oihw * scale[:, None, None, None], (2, 3, 1, 0))  # (kh,kw,Cin,Cout)
    w_in = jnp.arange(W)[:, None]
    w_out = jnp.arange(W)[None, :]
    dw = w_in - w_out
    kw_idx = jnp.clip(dw + 1, 0, 2)                          # (W, W)
    valid = (jnp.abs(dw) <= 1)[None, :, :, None, None]
    a = jnp.where(valid, w_t[:, kw_idx], 0.0)                # (3, W_in, W_out, Cin, Cout)
    a = jnp.transpose(a, (0, 1, 3, 2, 4))                    # (3, W_in, Cin, W_out, Cout)
    return a.reshape(3 * W * Cin, W * Cout).astype(dtype)


def prepare_basic_block_params(w1, s1, b1, w2, s2, b2, W, compute_dtype):
    """Model-load-time precompute (hoisted out of the per-forward path)."""
    Cout = w1.shape[0]
    a1 = build_band_weights(w1, s1, W, compute_dtype)
    a2 = build_band_weights(w2, s2, W, compute_dtype)
    b1_row = jnp.tile(b1, W).reshape(1, W * Cout).astype(jnp.float32)
    b2_row = jnp.tile(b2, W).reshape(1, W * Cout).astype(jnp.float32)
    return a1, b1_row, a2, b2_row


@jax.jit
def basic_block_pallas(x_nchw, a1, b1_row, a2, b2_row):
    """x_nchw: (N, C, H, W) f32.  a*/b*_row: precomputed band weights / bias rows."""
    N, C, H, W = x_nchw.shape
    WC = W * C

    # Sparsity probe #1 (raw input) + zero count in the wrapper: XLA fuses it
    # with the layout transpose; keeps kernel store/XLU slots free.
    smap0 = (x_nchw == 0).astype(jnp.uint8)
    z0 = jnp.sum(smap0.astype(jnp.int32))

    # NCHW -> (N*H, W*C): lane-dense rows, no spatial pre-padding.
    # TODO(synk): keep activations in this layout across the whole network to
    #             avoid the per-call NCHW<->NHWC transposes.
    x_rows = jnp.transpose(x_nchw, (0, 2, 3, 1)).reshape(N * H, WC)

    # Batch block size: B images per grid step; keep >= 4 grid steps (v7x) and
    # make B*H a multiple of 32 so the uint8 map store is a full 8-bit tile.
    B = 1
    for cand in (8, 4, 2):
        if N % cand == 0 and N // cand >= 4:
            B = cand
            break
    BH = B * H

    kernel = functools.partial(basic_block_kernel, H=H)

    out_rows, smap1_rows = pl.pallas_call(
        kernel,
        out_shape=(
            jax.ShapeDtypeStruct((N * H, WC), jnp.float32),   # fused block output
            jax.ShapeDtypeStruct((N * H, WC), jnp.uint8),     # smap(mid)
        ),
        grid_spec=pltpu.PrefetchScalarGridSpec(
            num_scalar_prefetch=0,
            grid=(N // B,),
            in_specs=[
                pl.BlockSpec((BH, WC), lambda n: (n, 0)),          # B images / step
                pl.BlockSpec((3 * WC, WC), lambda n: (0, 0)),      # conv1 bands (resident)
                pl.BlockSpec((1, WC), lambda n: (0, 0)),           # bn1 bias row
                pl.BlockSpec((3 * WC, WC), lambda n: (0, 0)),      # conv2 bands (resident)
                pl.BlockSpec((1, WC), lambda n: (0, 0)),           # bn2 bias row
            ],
            out_specs=(
                pl.BlockSpec((BH, WC), lambda n: (n, 0)),
                pl.BlockSpec((BH, WC), lambda n: (n, 0)),
            ),
        ),
        compiler_params=pltpu.CompilerParams(
            dimension_semantics=("parallel",),   # v7x: shard batch blocks over 2 TCs
        ),
    )(x_rows, a1, b1_row, a2, b2_row)

    out_nchw = jnp.transpose(out_rows.reshape(N, H, W, C), (0, 3, 1, 2))
    smap1_nchw = jnp.transpose(smap1_rows.reshape(N, H, W, C), (0, 3, 1, 2))
    z1 = jnp.sum(smap1_rows.astype(jnp.int32))
    return out_nchw, z0, z1, smap0, smap1_nchw


def basic_block_reference(x, w1, s1, b1, w2, s2, b2):
    """Pure-JAX reference (NCHW), mirrors the PyTorch forward (eval-mode BN)."""
    dn = ('NCHW', 'OIHW', 'NCHW')
    y = lax.conv_general_dilated(x, w1, (1, 1), 'SAME', dimension_numbers=dn)
    y = y * s1[None, :, None, None] + b1[None, :, None, None]
    y = jnp.maximum(y, 0.0)
    z = lax.conv_general_dilated(y, w2, (1, 1), 'SAME', dimension_numbers=dn)
    z = z * s2[None, :, None, None] + b2[None, :, None, None]
    out = jnp.maximum(z + x, 0.0)
    zeros0 = jnp.sum((x == 0).astype(jnp.int32))
    zeros1 = jnp.sum((y == 0).astype(jnp.int32))
    return out, zeros0, zeros1, (x == 0).astype(jnp.uint8), (y == 0).astype(jnp.uint8)


if __name__ == "__main__":
    # Small shapes: inplanes == planes (downsample=None branch), stride=1, fc_in=16.
    N, C, H, W = 8, 8, 16, 16     # W*C = 128 -> exactly one lane tile; grid = 4 steps
    key = jax.random.PRNGKey(0)
    kx, k1, k2, kg, kb, km, kv = jax.random.split(key, 7)

    # Input with genuine zeros so sparsity_rate / sparsity_map are non-trivial.
    x = jnp.maximum(jax.random.normal(kx, (N, C, H, W), jnp.float32), 0.0)

    # Deterministic conv weights (PyTorch OIHW layout), bias=False.
    w1 = jax.random.normal(k1, (C, C, 3, 3), jnp.float32) * 0.1
    w2 = jax.random.normal(k2, (C, C, 3, 3), jnp.float32) * 0.1

    # Non-trivial eval-mode BatchNorm2d params, folded to scale/bias.
    eps = 1e-5
    gamma = 1.0 + 0.1 * jax.random.normal(kg, (C,), jnp.float32)
    beta = 0.1 * jax.random.normal(kb, (C,), jnp.float32)
    rmean = 0.05 * jax.random.normal(km, (C,), jnp.float32)
    rvar = 1.0 + 0.1 * jax.random.uniform(kv, (C,), jnp.float32)
    s1 = gamma / jnp.sqrt(rvar + eps)
    b1 = beta - rmean * s1
    s2, b2 = s1, b1            # reuse for bn2 (same shapes)

    # Model-load-time precompute (hoisted out of the forward path).
    params_f32 = prepare_basic_block_params(w1, s1, b1, w2, s2, b2, W, jnp.float32)
    params_bf16 = prepare_basic_block_params(w1, s1, b1, w2, s2, b2, W, jnp.bfloat16)

    # --- f32 compute path: exact semantics ---
    out, z0, z1, smap0, smap1 = jax.block_until_ready(
        basic_block_pallas(x, *params_f32))

    # PyTorch-style return structure: (out, zeros, sizes, smaps)
    zeros = [int(z0), int(z1)]
    sizes = [x.size, out.size]
    smaps = [smap0, smap1]

    ref_out, ref_z0, ref_z1, ref_s0, ref_s1 = basic_block_reference(
        x, w1, s1, b1, w2, s2, b2)
    assert jnp.allclose(out, ref_out, atol=1e-4, rtol=1e-4)
    assert int(ref_z0) == zeros[0]
    assert bool(jnp.all(smap0 == ref_s0))
    # The post-ReLU intermediate map: allow a couple of borderline flips caused
    # by different (but both valid) f32 accumulation orders near exact zero.
    assert abs(int(ref_z1) - zeros[1]) <= 2
    assert int(jnp.sum(smap1 != ref_s1)) <= 2

    # --- bf16 MXU operands (all generations; f32 accumulation / f32 VPU math) ---
    out_bf16, _, _, _, _ = jax.block_until_ready(
        basic_block_pallas(x, *params_bf16))
    assert jnp.allclose(out_bf16, ref_out, atol=7.5e-2, rtol=5e-2)

    print("KERNEL_OK")
</pallas_src>

<mosaic_0001>
module attributes {stable_mosaic.version = 11 : i64} {
  func.func @basic_block_kernel(%arg0: i32, %arg1: memref<32x128xf32, #tpu.memory_space<vmem>>, %arg2: memref<384x128xf32, #tpu.memory_space<vmem>>, %arg3: memref<1x128xf32, #tpu.memory_space<vmem>>, %arg4: memref<384x128xf32, #tpu.memory_space<vmem>>, %arg5: memref<1x128xf32, #tpu.memory_space<vmem>>, %arg6: memref<32x128xf32, #tpu.memory_space<vmem>>, %arg7: memref<32x128xi8, #tpu.memory_space<vmem>>) attributes {dimension_semantics = [#tpu.dimension_semantics<parallel>], iteration_bounds = array<i64: 4>, scalar_prefetch = 0 : i64, scratch_operands = 0 : i64, tpu.core_type = #tpu.core_type<tc>, window_params = [{transform_indices = @transform_0, window_bounds = array<i64: 32, 128>}, {pipeline_mode = #tpu.pipeline_mode<synchronous>, transform_indices = @transform_1, window_bounds = array<i64: 384, 128>}, {pipeline_mode = #tpu.pipeline_mode<synchronous>, transform_indices = @transform_2, window_bounds = array<i64: 1, 128>}, {pipeline_mode = #tpu.pipeline_mode<synchronous>, transform_indices = @transform_3, window_bounds = array<i64: 384, 128>}, {pipeline_mode = #tpu.pipeline_mode<synchronous>, transform_indices = @transform_4, window_bounds = array<i64: 1, 128>}, {transform_indices = @transform_5, window_bounds = array<i64: 32, 128>}, {transform_indices = @transform_6, window_bounds = array<i64: 32, 128>}]} {
    %c0 = arith.constant 0 : index
    %c0_0 = arith.constant 0 : index
    %0 = vector.load %arg1[%c0, %c0_0] : memref<32x128xf32, #tpu.memory_space<vmem>>, vector<32x128xf32>
    %1 = tpu.iota {dimensions = array<i32: 0>} : vector<32x128xi32>
    %c16_i32 = arith.constant 16 : i32
    %c0_i32 = arith.constant 0 : i32
    %2 = arith.cmpi eq, %c16_i32, %c0_i32 : i32
    %c1_i32 = arith.constant 1 : i32
    %3 = arith.select %2, %c1_i32, %c16_i32 : i32
    %4 = vector.broadcast %3 : i32 to vector<32x128xi32>
    %5 = arith.remsi %1, %4 : vector<32x128xi32>
    %c0_i32_1 = arith.constant 0 : i32
    %6 = vector.broadcast %c0_i32_1 : i32 to vector<32x128xi32>
    %7 = arith.cmpi ne, %5, %6 : vector<32x128xi32>
    %c0_i32_2 = arith.constant 0 : i32
    %8 = vector.broadcast %c0_i32_2 : i32 to vector<32x128xi32>
    %9 = arith.cmpi slt, %5, %8 : vector<32x128xi32>
    %c0_i32_3 = arith.constant 0 : i32
    %10 = arith.cmpi slt, %3, %c0_i32_3 : i32
    %11 = vector.broadcast %10 : i1 to vector<32x128xi1>
    %12 = vector.broadcast %11 : vector<32x128xi1> to vector<32x128xi1>
    %13 = arith.xori %9, %12 : vector<32x128xi1>
    %14 = arith.andi %13, %7 : vector<32x128xi1>
    %15 = vector.broadcast %3 : i32 to vector<32x128xi32>
    %16 = arith.addi %5, %15 : vector<32x128xi32>
    %17 = arith.select %14, %16, %5 : vector<32x128xi1>, vector<32x128xi32>
    %c0_i32_4 = arith.constant 0 : i32
    %18 = vector.broadcast %c0_i32_4 : i32 to vector<32x128xi32>
    %19 = arith.cmpi eq, %17, %18 : vector<32x128xi32>
    %c15_i32 = arith.constant 15 : i32
    %20 = vector.broadcast %c15_i32 : i32 to vector<32x128xi32>
    %21 = arith.cmpi eq, %17, %20 : vector<32x128xi32>
    %cst = arith.constant 0.000000e+00 : f32
    %22 = vector.broadcast %cst : f32 to vector<32x128xf32>
    %c1_i32_5 = arith.constant 1 : i32
    %23 = tpu.dynamic_rotate %0 by %c1_i32_5 dim 0 : vector<32x128xf32>, i32 -> vector<32x128xf32>
    %24 = arith.select %19, %22, %23 : vector<32x128xi1>, vector<32x128xf32>
    %c31_i32 = arith.constant 31 : i32
    %25 = tpu.dynamic_rotate %0 by %c31_i32 dim 0 : vector<32x128xf32>, i32 -> vector<32x128xf32>
    %26 = arith.select %21, %22, %25 : vector<32x128xi1>, vector<32x128xf32>
    %27 = tpu.concatenate %24, %0, %26 in 1 : vector<32x128xf32>, vector<32x128xf32>, vector<32x128xf32> -> vector<32x384xf32>
    %c0_6 = arith.constant 0 : index
    %c0_7 = arith.constant 0 : index
    %28 = vector.load %arg2[%c0_6, %c0_7] : memref<384x128xf32, #tpu.memory_space<vmem>>, vector<384x128xf32>
    %cst_8 = arith.constant dense<0.000000e+00> : vector<32x128xf32>
    %29 = tpu.matmul %27, %28, %cst_8 {dimension_numbers = #tpu.dot_dimension_numbers<[1], [0], [0], [1], [0, 0, 1, 1], [], []>} : vector<32x384xf32>, vector<384x128xf32>, vector<32x128xf32> -> vector<32x128xf32>
    %c0_9 = arith.constant 0 : index
    %c0_10 = arith.constant 0 : index
    %30 = vector.load %arg3[%c0_9, %c0_10] : memref<1x128xf32, #tpu.memory_space<vmem>>, vector<1x128xf32>
    %31 = vector.broadcast %30 : vector<1x128xf32> to vector<32x128xf32>
    %32 = arith.addf %29, %31 : vector<32x128xf32>
    %cst_11 = arith.constant 0.000000e+00 : f32
    %33 = vector.broadcast %cst_11 : f32 to vector<32x128xf32>
    %34 = arith.maximumf %32, %33 : vector<32x128xf32>
    %cst_12 = arith.constant 0.000000e+00 : f32
    %35 = vector.broadcast %cst_12 : f32 to vector<32x128xf32>
    %36 = arith.cmpf oeq, %34, %35 : vector<32x128xf32>
    %37 = arith.extui %36 : vector<32x128xi1> to vector<32x128xi8>
    %c0_13 = arith.constant 0 : index
    %c0_14 = arith.constant 0 : index
    %38 = vector.load %arg7[%c0_13, %c0_14] : memref<32x128xi8, #tpu.memory_space<vmem>>, vector<32x128xi8>
    tpu.vector_store %arg7[%c0_13, %c0_14], %37 {strides = array<i32>} : memref<32x128xi8, #tpu.memory_space<vmem>>, vector<32x128xi8>,
    %c1_i32_15 = arith.constant 1 : i32
    %39 = tpu.dynamic_rotate %34 by %c1_i32_15 dim 0 : vector<32x128xf32>, i32 -> vector<32x128xf32>
    %40 = arith.select %19, %22, %39 : vector<32x128xi1>, vector<32x128xf32>
    %c31_i32_16 = arith.constant 31 : i32
    %41 = tpu.dynamic_rotate %34 by %c31_i32_16 dim 0 : vector<32x128xf32>, i32 -> vector<32x128xf32>
    %42 = arith.select %21, %22, %41 : vector<32x128xi1>, vector<32x128xf32>
    %43 = tpu.concatenate %40, %34, %42 in 1 : vector<32x128xf32>, vector<32x128xf32>, vector<32x128xf32> -> vector<32x384xf32>
    %c0_17 = arith.constant 0 : index
    %c0_18 = arith.constant 0 : index
    %44 = vector.load %arg4[%c0_17, %c0_18] : memref<384x128xf32, #tpu.memory_space<vmem>>, vector<384x128xf32>
    %cst_19 = arith.constant dense<0.000000e+00> : vector<32x128xf32>
    %45 = tpu.matmul %43, %44, %cst_19 {dimension_numbers = #tpu.dot_dimension_numbers<[1], [0], [0], [1], [0, 0, 1, 1], [], []>} : vector<32x384xf32>, vector<384x128xf32>, vector<32x128xf32> -> vector<32x128xf32>
    %c0_20 = arith.constant 0 : index
    %c0_21 = arith.constant 0 : index
    %46 = vector.load %arg5[%c0_20, %c0_21] : memref<1x128xf32, #tpu.memory_space<vmem>>, vector<1x128xf32>
    %47 = vector.broadcast %46 : vector<1x128xf32> to vector<32x128xf32>
    %48 = arith.addf %45, %47 : vector<32x128xf32>
    %49 = arith.addf %48, %0 : vector<32x128xf32>
    %cst_22 = arith.constant 0.000000e+00 : f32
    %50 = vector.broadcast %cst_22 : f32 to vector<32x128xf32>
    %51 = arith.maximumf %49, %50 : vector<32x128xf32>
    %c0_23 = arith.constant 0 : index
    %c0_24 = arith.constant 0 : index
    %52 = vector.load %arg6[%c0_23, %c0_24] : memref<32x128xf32, #tpu.memory_space<vmem>>, vector<32x128xf32>
    tpu.vector_store %arg6[%c0_23, %c0_24], %51 {strides = array<i32>} : memref<32x128xf32, #tpu.memory_space<vmem>>, vector<32x128xf32>,
    return
  }
  func.func @transform_0(%arg0: i32) -> (i32, i32) {
    %c0_i32 = arith.constant 0 : i32
    %c0_i32_0 = arith.constant 0 : i32
    return %arg0, %c0_i32 : i32, i32
  }
  func.func @transform_1(%arg0: i32) -> (i32, i32) {
    %c0_i32 = arith.constant 0 : i32
    %c0_i32_0 = arith.constant 0 : i32
    %c0_i32_1 = arith.constant 0 : i32
    return %c0_i32, %c0_i32_0 : i32, i32
  }
  func.func @transform_2(%arg0: i32) -> (i32, i32) {
    %c0_i32 = arith.constant 0 : i32
    %c0_i32_0 = arith.constant 0 : i32
    %c0_i32_1 = arith.constant 0 : i32
    return %c0_i32, %c0_i32_0 : i32, i32
  }
  func.func @transform_3(%arg0: i32) -> (i32, i32) {
    %c0_i32 = arith.constant 0 : i32
    %c0_i32_0 = arith.constant 0 : i32
    %c0_i32_1 = arith.constant 0 : i32
    return %c0_i32, %c0_i32_0 : i32, i32
  }
  func.func @transform_4(%arg0: i32) -> (i32, i32) {
    %c0_i32 = arith.constant 0 : i32
    %c0_i32_0 = arith.constant 0 : i32
    %c0_i32_1 = arith.constant 0 : i32
    return %c0_i32, %c0_i32_0 : i32, i32
  }
  func.func @transform_5(%arg0: i32) -> (i32, i32) {
    %c0_i32 = arith.constant 0 : i32
    %c0_i32_0 = arith.constant 0 : i32
    return %arg0, %c0_i32 : i32, i32
  }
  func.func @transform_6(%arg0: i32) -> (i32, i32) {
    %c0_i32 = arith.constant 0 : i32
    %c0_i32_0 = arith.constant 0 : i32
    return %arg0, %c0_i32 : i32, i32
  }
}

</mosaic_0001>

<llo_original>
// kernel: basic_block_pallas.1
$region0: #{basic_block_pallas.1}
  #allocation0 [shape = 'u32[]', space=smem, size = 0x4, offset = 0x4, fixed_abs, tag = 'smem constant byte address 0x4 - core index']
  #allocation1 [shape = 'u32[72,128]{1,0:T(1,128)}', space=vmem, size = 0x9000, scoped, tag = 'internal scratch']
  %s0 = inlined_call_operand.vmem [shape: f32[128,128], index: 0, kind: input, shape index: {}]
  %s1 = inlined_call_operand.vmem [shape: f32[384,128], index: 1, kind: input, shape index: {}]
  %s2 = inlined_call_operand.vmem [shape: f32[1,128], index: 2, kind: input, shape index: {}]
  %s3 = inlined_call_operand.vmem [shape: f32[384,128], index: 3, kind: input, shape index: {}]
  %s4 = inlined_call_operand.vmem [shape: f32[1,128], index: 4, kind: input, shape index: {}]
  %s5 = inlined_call_operand.vmem [shape: f32[128,128], index: 5, kind: output, shape index: {0}]
  %s6 = inlined_call_operand.vmem [shape: u8[128,128], index: 6, kind: output, shape index: {1}]
  %7 = xla_tuple %s5, %s6
  %s8 = sld [smem:[#allocation0]]
  $region61: #{basic_block_pallas.1} parent=0
    _
  %s10 = ssub.s32 1, %s8
  %s11 = scalar_select 0, %s10, %s8
  loop: start=0, step=1, limit=6
  $region2: #{basic_block_pallas.1} parent=0 // loop_pre_header
    _
  $region3: #{basic_block_pallas.1} parent=0 // loop_header
    %s13 = sphi 0, %s17
    %p14 = scmp.ge.s32.totalorder %s13, 6
    %s23 = sphi 0, %s25
    %s26 = sphi 0, %s23
    %s27 = sphi 0, %s26
    %s43 = sphi 0, %s27
    %s47 = sphi 0, %s47
    %s49 = sphi 0, %s47
    %s50 = sphi 0, %s49
    %s64 = sphi 0, %s50
    %s68 = sphi 0, %s68
    %s70 = sphi 0, %s68
    %s71 = sphi 0, %s70
    %s85 = sphi 0, %s71
    %s89 = sphi 0, %s89
    %s91 = sphi 0, %s89
    %s92 = sphi 0, %s91
    %s106 = sphi 0, %s92
    %s110 = sphi 0, %s110
    %s112 = sphi 0, %s110
    %s113 = sphi 0, %s112
    %s127 = sphi 0, %s113
    %s133 = sphi 0, %s135
    %s136 = sphi 0, %s133
    %s137 = sphi 0, %s136
    %s153 = sphi 0, %s137
    %s159 = sphi 0, %s161
    %s162 = sphi 0, %s159
    %s163 = sphi 0, %s162
    %s179 = sphi 0, %s163
  $region4: #{basic_block_pallas.1} parent=0 // loop_header_branch
    %16 = sbr.rel (%p14) target = $region8
  $region5: #{basic_block_pallas.1} parent=0 // loop_body
    %s18 = ssub.s32 %s13, 1
    %s19 = ssub.s32 %s13, 2
    %s20 = sadd.s32 %s13, 1
    %s21 = ssub.s32 %s13, %s20
    %p22 = scmp.eq.s32.totalorder %s21, 0
    %s24 = sadd.s32 %s23, 1
    %s25 = scalar_select %p22, %s23, %s24
    %p28 = pneg %p22
    %p29 = scmp.eq.s32.totalorder %s13, 3
    %p30 = por %p28, %p29
    %p31 = scmp.ne.s32.totalorder %s23, %s26
    %p32 = scmp.eq.s32.totalorder %s13, 0
    %p33 = por %p31, %p32
    %p34 = scmp.ne.s32.totalorder %s23, %s26
    %p35 = scmp.eq.s32.totalorder %s18, 3
    %p36 = por %p34, %p35
    %p37 = scmp.ne.s32.totalorder %s26, %s27
    %p38 = scmp.eq.s32.totalorder %s18, 0
    %p39 = por %p37, %p38
    %p40 = scmp.ne.s32.totalorder %s26, %s27
    %p41 = scmp.eq.s32.totalorder %s19, 3
    %p42 = por %p40, %p41
    %p44 = scmp.ne.s32.totalorder %s27, %s43
    %p45 = scmp.eq.s32.totalorder %s19, 0
    %p46 = por %p44, %p45
    %s48 = sadd.s32 %s47, 1
    %p51 = scmp.eq.s32.totalorder %s13, 3
    %p52 = scmp.ne.s32.totalorder %s47, %s49
    %p53 = scmp.eq.s32.totalorder %s13, 0
    %p54 = por %p52, %p53
    %p55 = scmp.ne.s32.totalorder %s47, %s49
    %p56 = scmp.eq.s32.totalorder %s18, 3
    %p57 = por %p55, %p56
    %p58 = scmp.ne.s32.totalorder %s49, %s50
    %p59 = scmp.eq.s32.totalorder %s18, 0
    %p60 = por %p58, %p59
    %p61 = scmp.ne.s32.totalorder %s49, %s50
    %p62 = scmp.eq.s32.totalorder %s19, 3
    %p63 = por %p61, %p62
    %p65 = scmp.ne.s32.totalorder %s50, %s64
    %p66 = scmp.eq.s32.totalorder %s19, 0
    %p67 = por %p65, %p66
    %s69 = sadd.s32 %s68, 1
    %p72 = scmp.eq.s32.totalorder %s13, 3
    %p73 = scmp.ne.s32.totalorder %s68, %s70
    %p74 = scmp.eq.s32.totalorder %s13, 0
    %p75 = por %p73, %p74
    %p76 = scmp.ne.s32.totalorder %s68, %s70
    %p77 = scmp.eq.s32.totalorder %s18, 3
    %p78 = por %p76, %p77
    %p79 = scmp.ne.s32.totalorder %s70, %s71
    %p80 = scmp.eq.s32.totalorder %s18, 0
    %p81 = por %p79, %p80
    %p82 = scmp.ne.s32.totalorder %s70, %s71
    %p83 = scmp.eq.s32.totalorder %s19, 3
    %p84 = por %p82, %p83
    %p86 = scmp.ne.s32.totalorder %s71, %s85
    %p87 = scmp.eq.s32.totalorder %s19, 0
    %p88 = por %p86, %p87
    %s90 = sadd.s32 %s89, 1
    %p93 = scmp.eq.s32.totalorder %s13, 3
    %p94 = scmp.ne.s32.totalorder %s89, %s91
    %p95 = scmp.eq.s32.totalorder %s13, 0
    %p96 = por %p94, %p95
    %p97 = scmp.ne.s32.totalorder %s89, %s91
    %p98 = scmp.eq.s32.totalorder %s18, 3
    %p99 = por %p97, %p98
    %p100 = scmp.ne.s32.totalorder %s91, %s92
    %p101 = scmp.eq.s32.totalorder %s18, 0
    %p102 = por %p100, %p101
    %p103 = scmp.ne.s32.totalorder %s91, %s92
    %p104 = scmp.eq.s32.totalorder %s19, 3
    %p105 = por %p103, %p104
    %p107 = scmp.ne.s32.totalorder %s92, %s106
    %p108 = scmp.eq.s32.totalorder %s19, 0
    %p109 = por %p107, %p108
    %s111 = sadd.s32 %s110, 1
    %p114 = scmp.eq.s32.totalorder %s13, 3
    %p115 = scmp.ne.s32.totalorder %s110, %s112
    %p116 = scmp.eq.s32.totalorder %s13, 0
    %p117 = por %p115, %p116
    %p118 = scmp.ne.s32.totalorder %s110, %s112
    %p119 = scmp.eq.s32.totalorder %s18, 3
    %p120 = por %p118, %p119
    %p121 = scmp.ne.s32.totalorder %s112, %s113
    %p122 = scmp.eq.s32.totalorder %s18, 0
    %p123 = por %p121, %p122
    %p124 = scmp.ne.s32.totalorder %s112, %s113
    %p125 = scmp.eq.s32.totalorder %s19, 3
    %p126 = por %p124, %p125
    %p128 = scmp.ne.s32.totalorder %s113, %s127
    %p129 = scmp.eq.s32.totalorder %s19, 0
    %p130 = por %p128, %p129
    %s131 = ssub.s32 %s13, %s20
    %p132 = scmp.eq.s32.totalorder %s131, 0
    %s134 = sadd.s32 %s133, 1
    %s135 = scalar_select %p132, %s133, %s134
    %p138 = pneg %p132
    %p139 = scmp.eq.s32.totalorder %s13, 3
    %p140 = por %p138, %p139
    %p141 = scmp.ne.s32.totalorder %s133, %s136
    %p142 = scmp.eq.s32.totalorder %s13, 0
    %p143 = por %p141, %p142
    %p144 = scmp.ne.s32.totalorder %s133, %s136
    %p145 = scmp.eq.s32.totalorder %s18, 3
    %p146 = por %p144, %p145
    %p147 = scmp.ne.s32.totalorder %s136, %s137
    %p148 = scmp.eq.s32.totalorder %s18, 0
    %p149 = por %p147, %p148
    %p150 = scmp.ne.s32.totalorder %s136, %s137
    %p151 = scmp.eq.s32.totalorder %s19, 3
    %p152 = por %p150, %p151
    %p154 = scmp.ne.s32.totalorder %s137, %s153
    %p155 = scmp.eq.s32.totalorder %s19, 0
    %p156 = por %p154, %p155
    %s157 = ssub.s32 %s13, %s20
    %p158 = scmp.eq.s32.totalorder %s157, 0
    %s160 = sadd.s32 %s159, 1
    %s161 = scalar_select %p158, %s159, %s160
    %p164 = pneg %p158
    %p165 = scmp.eq.s32.totalorder %s13, 3
    %p166 = por %p164, %p165
    %p167 = scmp.ne.s32.totalorder %s159, %s162
    %p168 = scmp.eq.s32.totalorder %s13, 0
    %p169 = por %p167, %p168
    %p170 = scmp.ne.s32.totalorder %s159, %s162
    %p171 = scmp.eq.s32.totalorder %s18, 3
    %p172 = por %p170, %p171
    %p173 = scmp.ne.s32.totalorder %s162, %s163
    %p174 = scmp.eq.s32.totalorder %s18, 0
    %p175 = por %p173, %p174
    %p176 = scmp.ne.s32.totalorder %s162, %s163
    %p177 = scmp.eq.s32.totalorder %s19, 3
    %p178 = por %p176, %p177
    %p180 = scmp.ne.s32.totalorder %s163, %s179
    %p181 = scmp.eq.s32.totalorder %s19, 0
    %p182 = por %p180, %p181
    %p183 = scmp.le.s32.totalorder 1, %s13
    %p184 = scmp.lt.s32.totalorder %s13, 5
    %p185 = pnand %p183, %p184
    %p186 = pneg %p185
    // Predicated region
    $region9: #{basic_block_pallas.1} parent=5 // pred_check
      _
    $region10: #{basic_block_pallas.1} parent=5 // pred_check_branch
      %188 = sbr.rel (%p185) target = $region12
    $region11: #{basic_block_pallas.1} parent=5 // pred_region
      %s189 = ssub.s32 %s13, 1
      // Predicated region
      $region13: #{basic_block_pallas.1} parent=11 // pred_check
        %p190 = pneg %p60
      $region14: #{basic_block_pallas.1} parent=11 // pred_check_branch
        %192 = sbr.rel (%p190) target = $region16
      $region15: #{basic_block_pallas.1} parent=11 // pred_region
        _
      $region16: #{basic_block_pallas.1} parent=11 // pred_fallthru
        _
      // Predicated region
      $region17: #{basic_block_pallas.1} parent=11 // pred_check
        %p193 = pneg %p81
      $region18: #{basic_block_pallas.1} parent=11 // pred_check_branch
        %195 = sbr.rel (%p193) target = $region20
      $region19: #{basic_block_pallas.1} parent=11 // pred_region
        _
      $region20: #{basic_block_pallas.1} parent=11 // pred_fallthru
        _
      // Predicated region
      $region21: #{basic_block_pallas.1} parent=11 // pred_check
        %p196 = pneg %p102
      $region22: #{basic_block_pallas.1} parent=11 // pred_check_branch
        %198 = sbr.rel (%p196) target = $region24
      $region23: #{basic_block_pallas.1} parent=11 // pred_region
        _
      $region24: #{basic_block_pallas.1} parent=11 // pred_fallthru
        _
      // Predicated region
      $region25: #{basic_block_pallas.1} parent=11 // pred_check
        %p199 = pneg %p123
      $region26: #{basic_block_pallas.1} parent=11 // pred_check_branch
        %201 = sbr.rel (%p199) target = $region28
      $region27: #{basic_block_pallas.1} parent=11 // pred_region
        _
      $region28: #{basic_block_pallas.1} parent=11 // pred_fallthru
        _
    $region12: #{basic_block_pallas.1} parent=5 // pred_fallthru
      _
    %p202 = scmp.lt.s32.totalorder %s13, 4
    // Predicated region
    $region29: #{basic_block_pallas.1} parent=5 // pred_check
      %p203 = pneg %p202
    $region30: #{basic_block_pallas.1} parent=5 // pred_check_branch
      %205 = sbr.rel (%p203) target = $region32
    $region31: #{basic_block_pallas.1} parent=5 // pred_region
      // Predicated region
      $region33: #{basic_block_pallas.1} parent=31 // pred_check
        %p206 = pneg %p33
      $region34: #{basic_block_pallas.1} parent=31 // pred_check_branch
        %208 = sbr.rel (%p206) target = $region36
      $region35: #{basic_block_pallas.1} parent=31 // pred_region
        %s209 = smul.u32 4, %s13
        %p210 = scmp.lt.s32.totalorder %s209, 15
        %s211 = scalar_select %p210, %s209, 15
        %s212 = smul.addr %s211, 8
        %s213 = scalar_lea.vmem %s0, %s212
        %s214 = smul.u32 4, %s13
      $region36: #{basic_block_pallas.1} parent=31 // pred_fallthru
        _
    $region32: #{basic_block_pallas.1} parent=5 // pred_fallthru
      _
    %p215 = scmp.le.s32.totalorder 1, %s13
    %p216 = scmp.lt.s32.totalorder %s13, 5
    %p217 = pnand %p215, %p216
    %p218 = pneg %p217
    // Predicated region
    $region37: #{basic_block_pallas.1} parent=5 // pred_check
      _
    $region38: #{basic_block_pallas.1} parent=5 // pred_check_branch
      %220 = sbr.rel (%p217) target = $region40
    $region39: #{basic_block_pallas.1} parent=5 // pred_region
      %s221 = ssub.s32 %s13, 1
      %s222 = smul.u32 4, %s18
      %p223 = scmp.lt.s32.totalorder %s222, 15
      %s224 = scalar_select %p223, %s222, 15
      %s225 = smul.addr %s224, 8
      %s226 = scalar_lea.vmem %s0, %s225
      %p227 = pneg %p39
      %p228 = pneg %p36
      %p229 = pneg %p60
      %p230 = pneg %p57
      %p231 = pneg %p81
      %p232 = pneg %p78
      %p233 = pneg %p102
      %p234 = pneg %p99
      %p235 = pneg %p123
      %p236 = pneg %p120
      %p237 = pneg %p149
      %p238 = pneg %p146
      %s239 = smul.u32 4, %s18
      %p240 = scmp.lt.s32.totalorder %s239, 15
      %s241 = scalar_select %p240, %s239, 15
      %s242 = smul.addr %s241, 8
      %s243 = scalar_lea.vmem %s5, %s242
      %p244 = pneg %p175
      %p245 = pneg %p172
      %s246 = smul.u32 4, %s18
      %p247 = scmp.lt.s32.totalorder %s246, 15
      %s248 = scalar_select %p247, %s246, 15
      %s249 = smul.addr %s248, 2
      %s250 = scalar_lea.vmem %s6, %s249
      %s251 = smul.u32 4, %s18
      %p252 = scmp.lt.s32.totalorder %s251, 15
      %s253 = scalar_select %p252, %s251, 15
      %s254 = smul.addr %s253, 8
      %s255 = scalar_lea.vmem %s0, %s254
      %s256 = smul.u32 4, %s18
      %s257 = smul.u32 4, %s18
      %p258 = scmp.lt.s32.totalorder %s257, 15
      %s259 = scalar_select %p258, %s257, 15
      %s260 = smul.addr %s259, 8
      %s261 = scalar_lea.vmem %s5, %s260
      %s262 = smul.u32 4, %s18
      %s263 = smul.u32 4, %s18
      %p264 = scmp.lt.s32.totalorder %s263, 15
      %s265 = scalar_select %p264, %s263, 15
      %s266 = smul.addr %s265, 2
      %s267 = scalar_lea.vmem %s6, %s266
      %s268 = smul.u32 4, %s18
      %v271 = vld [vmem:[%s255] sm:$0xff]
      %v272 = vld [vmem:[%s255 + $0x8] sm:$0xff]
      %v273 = vld [vmem:[%s255 + $0x10] sm:$0xff]
      %v274 = vld [vmem:[%s255 + $0x18] sm:$0xff]
      %v275 = vlaneseq
      %v276 = vshrl.u32 %v275, 7
      %v277 = vadd.s32 %v276, 8
      %v278 = vadd.s32 %v276, 16
      %v279 = vadd.s32 %v276, 24
      %vm280 = vcmp.lt.s32.totalorder %v276, 0
      %v281 = vsub.s32 0, %v276
      %v282 = vsel %vm280, %v281, %v276
      %v283 = vshrl.u32 %v282, 4
      %v284 = vand.u32 %v282, 15
      %v285 = vsub.s32 0, %v284
      %v286 = vsel %vm280, %v285, %v284
      %vm287 = vcmp.lt.s32.totalorder %v277, 0
      %v288 = vsub.s32 0, %v277
      %v289 = vsel %vm287, %v288, %v277
      %v290 = vshrl.u32 %v289, 4
      %v291 = vand.u32 %v289, 15
      %v292 = vsub.s32 0, %v291
      %v293 = vsel %vm287, %v292, %v291
      %vm294 = vcmp.lt.s32.totalorder %v278, 0
      %v295 = vsub.s32 0, %v278
      %v296 = vsel %vm294, %v295, %v278
      %v297 = vshrl.u32 %v296, 4
      %v298 = vand.u32 %v296, 15
      %v299 = vsub.s32 0, %v298
      %v300 = vsel %vm294, %v299, %v298
      %vm301 = vcmp.lt.s32.totalorder %v279, 0
      %v302 = vsub.s32 0, %v279
      %v303 = vsel %vm301, %v302, %v279
      %v304 = vshrl.u32 %v303, 4
      %v305 = vand.u32 %v303, 15
      %v306 = vsub.s32 0, %v305
      %v307 = vsel %vm301, %v306, %v305
      %vm308 = vcmp.ne.s32.totalorder %v286, 0
      %vm309 = vcmp.ne.s32.totalorder %v293, 0
      %vm310 = vcmp.ne.s32.totalorder %v300, 0
      %vm311 = vcmp.ne.s32.totalorder %v307, 0
      %vm312 = vcmp.lt.s32.totalorder %v286, 0
      %vm313 = vcmp.lt.s32.totalorder %v293, 0
      %vm314 = vcmp.lt.s32.totalorder %v300, 0
      %vm315 = vcmp.lt.s32.totalorder %v307, 0
      %vm316 = vmand %vm312, %vm308
      %vm317 = vmand %vm313, %vm309
      %vm318 = vmand %vm314, %vm310
      %vm319 = vmand %vm315, %vm311
      %v320 = vadd.s32 %v286, 16
      %v321 = vadd.s32 %v293, 16
      %v322 = vadd.s32 %v300, 16
      %v323 = vadd.s32 %v307, 16
      %v324 = vsel %vm316, %v320, %v286
      %v325 = vsel %vm317, %v321, %v293
      %v326 = vsel %vm318, %v322, %v300
      %v327 = vsel %vm319, %v323, %v307
      %vm328 = vcmp.eq.s32.totalorder %v324, 0
      %vm329 = vcmp.eq.s32.totalorder %v325, 0
      %vm330 = vcmp.eq.s32.totalorder %v326, 0
      %vm331 = vcmp.eq.s32.totalorder %v327, 0
      %vm332 = vcmp.eq.s32.totalorder %v324, 15
      %vm333 = vcmp.eq.s32.totalorder %v325, 15
      %vm334 = vcmp.eq.s32.totalorder %v326, 15
      %vm335 = vcmp.eq.s32.totalorder %v327, 15
      %v336 = vrot.slane %v271, 7
      %v337 = vrot.slane %v272, 7
      %v338 = vrot.slane %v273, 7
      %v339 = vrot.slane %v274, 7
      %vm340 = vcmp.lt.s32.totalorder %v276, 1
      %v341 = vsel %vm340, %v338, %v339
      %v342 = vsel %vm340, %v337, %v338
      %v343 = vsel %vm340, %v336, %v337
      %v344 = vsel %vm340, %v339, %v336
      %v345 = vsel %vm328, 0.0, %v344
      %v346 = vsel %vm329, 0.0, %v343
      %v347 = vsel %vm330, 0.0, %v342
      %v348 = vsel %vm331, 0.0, %v341
      %v349 = vrot.slane %v271, 1
      %v350 = vrot.slane %v272, 1
      %v351 = vrot.slane %v273, 1
      %v352 = vrot.slane %v274, 1
      %vm353 = vcmp.lt.s32.totalorder %v276, 7
      %v354 = vsel %vm353, %v351, %v352
      %v355 = vsel %vm353, %v350, %v351
      %v356 = vsel %vm353, %v349, %v350
      %v357 = vsel %vm353, %v352, %v349
      %v358 = vsel %vm332, 0.0, %v356
      %v359 = vsel %vm333, 0.0, %v355
      %v360 = vsel %vm334, 0.0, %v354
      %v361 = vsel %vm335, 0.0, %v357
      %v362 = vld [vmem:[%s1] sm:$0xff]
      %v363 = vld [vmem:[%s1 + $0x8] sm:$0xff]
      %v364 = vld [vmem:[%s1 + $0x10] sm:$0xff]
      %v365 = vld [vmem:[%s1 + $0x18] sm:$0xff]
      %v366 = vld [vmem:[%s1 + $0x20] sm:$0xff]
      %v367 = vld [vmem:[%s1 + $0x28] sm:$0xff]
      %v368 = vld [vmem:[%s1 + $0x30] sm:$0xff]
      %v369 = vld [vmem:[%s1 + $0x38] sm:$0xff]
      %v370 = vld [vmem:[%s1 + $0x40] sm:$0xff]
      %v371 = vld [vmem:[%s1 + $0x48] sm:$0xff]
      %v372 = vld [vmem:[%s1 + $0x50] sm:$0xff]
      %v373 = vld [vmem:[%s1 + $0x58] sm:$0xff]
      %v374 = vld [vmem:[%s1 + $0x60] sm:$0xff]
      %v375 = vld [vmem:[%s1 + $0x68] sm:$0xff]
      %v376 = vld [vmem:[%s1 + $0x70] sm:$0xff]
      %v377 = vld [vmem:[%s1 + $0x78] sm:$0xff]
      %v378 = vld [vmem:[%s1 + $0x80] sm:$0xff]
      %v379 = vld [vmem:[%s1 + $0x88] sm:$0xff]
      %v380 = vld [vmem:[%s1 + $0x90] sm:$0xff]
      %v381 = vld [vmem:[%s1 + $0x98] sm:$0xff]
      %v382 = vld [vmem:[%s1 + $0xa0] sm:$0xff]
      %v383 = vld [vmem:[%s1 + $0xa8] sm:$0xff]
      %v384 = vld [vmem:[%s1 + $0xb0] sm:$0xff]
      %v385 = vld [vmem:[%s1 + $0xb8] sm:$0xff]
      %v386 = vld [vmem:[%s1 + $0xc0] sm:$0xff]
      %v387 = vld [vmem:[%s1 + $0xc8] sm:$0xff]
      %v388 = vld [vmem:[%s1 + $0xd0] sm:$0xff]
      %v389 = vld [vmem:[%s1 + $0xd8] sm:$0xff]
      %v390 = vld [vmem:[%s1 + $0xe0] sm:$0xff]
      %v391 = vld [vmem:[%s1 + $0xe8] sm:$0xff]
      %v392 = vld [vmem:[%s1 + $0xf0] sm:$0xff]
      %v393 = vld [vmem:[%s1 + $0xf8] sm:$0xff]
      %v394 = vld [vmem:[%s1 + $0x100] sm:$0xff]
      %v395 = vld [vmem:[%s1 + $0x108] sm:$0xff]
      %v396 = vld [vmem:[%s1 + $0x110] sm:$0xff]
      %v397 = vld [vmem:[%s1 + $0x118] sm:$0xff]
      %v398 = vld [vmem:[%s1 + $0x120] sm:$0xff]
      %v399 = vld [vmem:[%s1 + $0x128] sm:$0xff]
      %v400 = vld [vmem:[%s1 + $0x130] sm:$0xff]
      %v401 = vld [vmem:[%s1 + $0x138] sm:$0xff]
      %v402 = vld [vmem:[%s1 + $0x140] sm:$0xff]
      %v403 = vld [vmem:[%s1 + $0x148] sm:$0xff]
      %v404 = vld [vmem:[%s1 + $0x150] sm:$0xff]
      %v405 = vld [vmem:[%s1 + $0x158] sm:$0xff]
      %v406 = vld [vmem:[%s1 + $0x160] sm:$0xff]
      %v407 = vld [vmem:[%s1 + $0x168] sm:$0xff]
      %v408 = vld [vmem:[%s1 + $0x170] sm:$0xff]
      %v409 = vld [vmem:[%s1 + $0x178] sm:$0xff]
      %v410 = vld [vmem:[%s2] sm:$0x1]
      %v412 = vperm.slane %v410, 0
      %414 = vmatpush.msra.mxu0 %v377
      %415 = vmatpush.msra.mxu0 %v376
      %416 = vmatpush.msra.mxu0 %v375
      %417 = vmatpush.msra.mxu0 %v374
      %418 = vmatpush.msra.mxu0 %v373
      %419 = vmatpush.msra.mxu0 %v372
      %420 = vmatpush.msra.mxu0 %v371
      %421 = vmatpush.msra.mxu0 %v370
      %422 = vmatpush.msra.mxu0 %v369
      %423 = vmatpush.msra.mxu0 %v368
      %424 = vmatpush.msra.mxu0 %v367
      %425 = vmatpush.msra.mxu0 %v366
      %426 = vmatpush.msra.mxu0 %v365
      %427 = vmatpush.msra.mxu0 %v364
      %428 = vmatpush.msra.mxu0 %v363
      %429 = vmatpush.msra.mxu0 %v362
      %430 = vmatmul.f32.gmra.mxu0 %v345
      %v431 = vpop.f32.mrf.mxu0
      %v432 = vadd.f32 %v412, %v431
      %433 = vmatmul.f32.gmra.mxu0 %v346
      %v434 = vpop.f32.mrf.mxu0
      %v435 = vadd.f32 %v412, %v434
      %436 = vmatmul.f32.gmra.mxu0 %v347
      %v437 = vpop.f32.mrf.mxu0
      %v438 = vadd.f32 %v412, %v437
      %439 = vmatmul.f32.gmra.mxu0 %v348
      %v440 = vpop.f32.mrf.mxu0
      %v441 = vadd.f32 %v412, %v440
      %442 = vdwg.mxu0
      %443 = vmatpush.msra.mxu0 %v393
      %444 = vmatpush.msra.mxu0 %v392
      %445 = vmatpush.msra.mxu0 %v391
      %446 = vmatpush.msra.mxu0 %v390
      %447 = vmatpush.msra.mxu0 %v389
      %448 = vmatpush.msra.mxu0 %v388
      %449 = vmatpush.msra.mxu0 %v387
      %450 = vmatpush.msra.mxu0 %v386
      %451 = vmatpush.msra.mxu0 %v385
      %452 = vmatpush.msra.mxu0 %v384
      %453 = vmatpush.msra.mxu0 %v383
      %454 = vmatpush.msra.mxu0 %v382
      %455 = vmatpush.msra.mxu0 %v381
      %456 = vmatpush.msra.mxu0 %v380
      %457 = vmatpush.msra.mxu0 %v379
      %458 = vmatpush.msra.mxu0 %v378
      %459 = vmatmul.f32.gmra.mxu0 %v271
      %v460 = vpop.f32.mrf.mxu0
      %v461 = vadd.f32 %v432, %v460
      %462 = vmatmul.f32.gmra.mxu0 %v272
      %v463 = vpop.f32.mrf.mxu0
      %v464 = vadd.f32 %v435, %v463
      %465 = vmatmul.f32.gmra.mxu0 %v273
      %v466 = vpop.f32.mrf.mxu0
      %v467 = vadd.f32 %v438, %v466
      %468 = vmatmul.f32.gmra.mxu0 %v274
      %v469 = vpop.f32.mrf.mxu0
      %v470 = vadd.f32 %v441, %v469
      %471 = vdwg.mxu0
      %472 = vmatpush.msra.mxu0 %v409
      %473 = vmatpush.msra.mxu0 %v408
      %474 = vmatpush.msra.mxu0 %v407
      %475 = vmatpush.msra.mxu0 %v406
      %476 = vmatpush.msra.mxu0 %v405
      %477 = vmatpush.msra.mxu0 %v404
      %478 = vmatpush.msra.mxu0 %v403
      %479 = vmatpush.msra.mxu0 %v402
      %480 = vmatpush.msra.mxu0 %v401
      %481 = vmatpush.msra.mxu0 %v400
      %482 = vmatpush.msra.mxu0 %v399
      %483 = vmatpush.msra.mxu0 %v398
      %484 = vmatpush.msra.mxu0 %v397
      %485 = vmatpush.msra.mxu0 %v396
      %486 = vmatpush.msra.mxu0 %v395
      %487 = vmatpush.msra.mxu0 %v394
      %488 = vmatmul.f32.gmra.mxu0 %v358
      %v489 = vpop.f32.mrf.mxu0
      %v490 = vadd.f32 %v461, %v489
      %491 = vmatmul.f32.gmra.mxu0 %v359
      %v492 = vpop.f32.mrf.mxu0
      %v493 = vadd.f32 %v464, %v492
      %494 = vmatmul.f32.gmra.mxu0 %v360
      %v495 = vpop.f32.mrf.mxu0
      %v496 = vadd.f32 %v467, %v495
      %497 = vmatmul.f32.gmra.mxu0 %v361
      %v498 = vpop.f32.mrf.mxu0
      %v499 = vadd.f32 %v470, %v498
      %500 = vdwg.mxu0
      %v501 = vmax.f32 %v490, 0.0
      %v502 = vmax.f32 %v493, 0.0
      %v503 = vmax.f32 %v496, 0.0
      %v504 = vmax.f32 %v499, 0.0
      %vm505 = vcmp.eq.f32.partialorder %v501, 0.0
      %vm506 = vcmp.eq.f32.partialorder %v502, 0.0
      %vm507 = vcmp.eq.f32.partialorder %v503, 0.0
      %vm508 = vcmp.eq.f32.partialorder %v504, 0.0
      %vm509 = vmpackc.low %vm506, %vm505
      %vm510 = vmpackc.low %vm508, %vm507
      %v511 = vsel %vm509, 16711935, 0
      %v512 = vsel %vm510, 16711935, 0
      %v513 = vpack.c.b8 %v512, %v511
      %vm514 = vnez %v513
      %v515 = vsel %vm514, 16843009, 0
      %v516 = vunpack.c.0.s8 %v515
      %v517 = vunpack.c.1.s8 %v515
      %v518 = vunpack.c.2.s8 %v515
      %v519 = vunpack.c.3.s8 %v515
      %v520 = vpack.c.b16 %v516, %v516
      %v521 = vpack.c.b8 %v520, %v520
      %v522 = vpack.c.b16 %v517, %v517
      %v523 = vpack.c.b8 %v522, %v522
      %v524 = vpack.c.b16 %v518, %v518
      %v525 = vpack.c.b8 %v524, %v524
      %v526 = vpack.c.b16 %v519, %v519
      %v527 = vpack.c.b8 %v526, %v526
      %528 = vst [vmem:[%s267] sm:$0x3] %v521
      %529 = vst [vmem:[%s267 + $0x2] sm:$0x3] %v523
      %530 = vst [vmem:[%s267 + $0x4] sm:$0x3] %v525
      %531 = vst [vmem:[%s267 + $0x6] sm:$0x3] %v527
      %v532 = vrot.slane %v501, 7
      %v533 = vrot.slane %v502, 7
      %v534 = vrot.slane %v503, 7
      %v535 = vrot.slane %v504, 7
      %v536 = vsel %vm340, %v534, %v535
      %v537 = vsel %vm340, %v533, %v534
      %v538 = vsel %vm340, %v532, %v533
      %v539 = vsel %vm340, %v535, %v532
      %v540 = vsel %vm328, 0.0, %v539
      %v541 = vsel %vm329, 0.0, %v538
      %v542 = vsel %vm330, 0.0, %v537
      %v543 = vsel %vm331, 0.0, %v536
      %v544 = vrot.slane %v501, 1
      %v545 = vrot.slane %v502, 1
      %v546 = vrot.slane %v503, 1
      %v547 = vrot.slane %v504, 1
      %v548 = vsel %vm353, %v546, %v547
      %v549 = vsel %vm353, %v545, %v546
      %v550 = vsel %vm353, %v544, %v545
      %v551 = vsel %vm353, %v547, %v544
      %v552 = vsel %vm332, 0.0, %v550
      %v553 = vsel %vm333, 0.0, %v549
      %v554 = vsel %vm334, 0.0, %v548
      %v555 = vsel %vm335, 0.0, %v551
      %v556 = vld [vmem:[%s3] sm:$0xff]
      %v557 = vld [vmem:[%s3 + $0x8] sm:$0xff]
      %v558 = vld [vmem:[%s3 + $0x10] sm:$0xff]
      %v559 = vld [vmem:[%s3 + $0x18] sm:$0xff]
      %v560 = vld [vmem:[%s3 + $0x20] sm:$0xff]
      %v561 = vld [vmem:[%s3 + $0x28] sm:$0xff]
      %v562 = vld [vmem:[%s3 + $0x30] sm:$0xff]
      %v563 = vld [vmem:[%s3 + $0x38] sm:$0xff]
      %v564 = vld [vmem:[%s3 + $0x40] sm:$0xff]
      %v565 = vld [vmem:[%s3 + $0x48] sm:$0xff]
      %v566 = vld [vmem:[%s3 + $0x50] sm:$0xff]
      %v567 = vld [vmem:[%s3 + $0x58] sm:$0xff]
      %v568 = vld [vmem:[%s3 + $0x60] sm:$0xff]
      %v569 = vld [vmem:[%s3 + $0x68] sm:$0xff]
      %v570 = vld [vmem:[%s3 + $0x70] sm:$0xff]
      %v571 = vld [vmem:[%s3 + $0x78] sm:$0xff]
      %v572 = vld [vmem:[%s3 + $0x80] sm:$0xff]
      %v573 = vld [vmem:[%s3 + $0x88] sm:$0xff]
      %v574 = vld [vmem:[%s3 + $0x90] sm:$0xff]
      %v575 = vld [vmem:[%s3 + $0x98] sm:$0xff]
      %v576 = vld [vmem:[%s3 + $0xa0] sm:$0xff]
      %v577 = vld [vmem:[%s3 + $0xa8] sm:$0xff]
      %v578 = vld [vmem:[%s3 + $0xb0] sm:$0xff]
      %v579 = vld [vmem:[%s3 + $0xb8] sm:$0xff]
      %v580 = vld [vmem:[%s3 + $0xc0] sm:$0xff]
      %v581 = vld [vmem:[%s3 + $0xc8] sm:$0xff]
      %v582 = vld [vmem:[%s3 + $0xd0] sm:$0xff]
      %v583 = vld [vmem:[%s3 + $0xd8] sm:$0xff]
      %v584 = vld [vmem:[%s3 + $0xe0] sm:$0xff]
      %v585 = vld [vmem:[%s3 + $0xe8] sm:$0xff]
      %v586 = vld [vmem:[%s3 + $0xf0] sm:$0xff]
      %v587 = vld [vmem:[%s3 + $0xf8] sm:$0xff]
      %v588 = vld [vmem:[%s3 + $0x100] sm:$0xff]
      %v589 = vld [vmem:[%s3 + $0x108] sm:$0xff]
      %v590 = vld [vmem:[%s3 + $0x110] sm:$0xff]
      %v591 = vld [vmem:[%s3 + $0x118] sm:$0xff]
      %v592 = vld [vmem:[%s3 + $0x120] sm:$0xff]
      %v593 = vld [vmem:[%s3 + $0x128] sm:$0xff]
      %v594 = vld [vmem:[%s3 + $0x130] sm:$0xff]
      %v595 = vld [vmem:[%s3 + $0x138] sm:$0xff]
      %v596 = vld [vmem:[%s3 + $0x140] sm:$0xff]
      %v597 = vld [vmem:[%s3 + $0x148] sm:$0xff]
      %v598 = vld [vmem:[%s3 + $0x150] sm:$0xff]
      %v599 = vld [vmem:[%s3 + $0x158] sm:$0xff]
      %v600 = vld [vmem:[%s3 + $0x160] sm:$0xff]
      %v601 = vld [vmem:[%s3 + $0x168] sm:$0xff]
      %v602 = vld [vmem:[%s3 + $0x170] sm:$0xff]
      %v603 = vld [vmem:[%s3 + $0x178] sm:$0xff]
      %v604 = vld [vmem:[%s4] sm:$0x1]
      %v606 = vperm.slane %v604, 0
      %608 = vmatpush.msra.mxu0 %v571
      %609 = vmatpush.msra.mxu0 %v570
      %610 = vmatpush.msra.mxu0 %v569
      %611 = vmatpush.msra.mxu0 %v568
      %612 = vmatpush.msra.mxu0 %v567
      %613 = vmatpush.msra.mxu0 %v566
      %614 = vmatpush.msra.mxu0 %v565
      %615 = vmatpush.msra.mxu0 %v564
      %616 = vmatpush.msra.mxu0 %v563
      %617 = vmatpush.msra.mxu0 %v562
      %618 = vmatpush.msra.mxu0 %v561
      %619 = vmatpush.msra.mxu0 %v560
      %620 = vmatpush.msra.mxu0 %v559
      %621 = vmatpush.msra.mxu0 %v558
      %622 = vmatpush.msra.mxu0 %v557
      %623 = vmatpush.msra.mxu0 %v556
      %624 = vmatmul.f32.gmra.mxu0 %v540
      %v625 = vpop.f32.mrf.mxu0
      %v626 = vadd.f32 %v606, %v625
      %627 = vmatmul.f32.gmra.mxu0 %v541
      %v628 = vpop.f32.mrf.mxu0
      %v629 = vadd.f32 %v606, %v628
      %630 = vmatmul.f32.gmra.mxu0 %v542
      %v631 = vpop.f32.mrf.mxu0
      %v632 = vadd.f32 %v606, %v631
      %633 = vmatmul.f32.gmra.mxu0 %v543
      %v634 = vpop.f32.mrf.mxu0
      %v635 = vadd.f32 %v606, %v634
      %636 = vdwg.mxu0
      %637 = vmatpush.msra.mxu0 %v587
      %638 = vmatpush.msra.mxu0 %v586
      %639 = vmatpush.msra.mxu0 %v585
      %640 = vmatpush.msra.mxu0 %v584
      %641 = vmatpush.msra.mxu0 %v583
      %642 = vmatpush.msra.mxu0 %v582
      %643 = vmatpush.msra.mxu0 %v581
      %644 = vmatpush.msra.mxu0 %v580
      %645 = vmatpush.msra.mxu0 %v579
      %646 = vmatpush.msra.mxu0 %v578
      %647 = vmatpush.msra.mxu0 %v577
      %648 = vmatpush.msra.mxu0 %v576
      %649 = vmatpush.msra.mxu0 %v575
      %650 = vmatpush.msra.mxu0 %v574
      %651 = vmatpush.msra.mxu0 %v573
      %652 = vmatpush.msra.mxu0 %v572
      %653 = vmatmul.f32.gmra.mxu0 %v501
      %v654 = vpop.f32.mrf.mxu0
      %v655 = vadd.f32 %v626, %v654
      %656 = vmatmul.f32.gmra.mxu0 %v502
      %v657 = vpop.f32.mrf.mxu0
      %v658 = vadd.f32 %v629, %v657
      %659 = vmatmul.f32.gmra.mxu0 %v503
      %v660 = vpop.f32.mrf.mxu0
      %v661 = vadd.f32 %v632, %v660
      %662 = vmatmul.f32.gmra.mxu0 %v504
      %v663 = vpop.f32.mrf.mxu0
      %v664 = vadd.f32 %v635, %v663
      %665 = vdwg.mxu0
      %666 = vmatpush.msra.mxu0 %v603
      %667 = vmatpush.msra.mxu0 %v602
      %668 = vmatpush.msra.mxu0 %v601
      %669 = vmatpush.msra.mxu0 %v600
      %670 = vmatpush.msra.mxu0 %v599
      %671 = vmatpush.msra.mxu0 %v598
      %672 = vmatpush.msra.mxu0 %v597
      %673 = vmatpush.msra.mxu0 %v596
      %674 = vmatpush.msra.mxu0 %v595
      %675 = vmatpush.msra.mxu0 %v594
      %676 = vmatpush.msra.mxu0 %v593
      %677 = vmatpush.msra.mxu0 %v592
      %678 = vmatpush.msra.mxu0 %v591
      %679 = vmatpush.msra.mxu0 %v590
      %680 = vmatpush.msra.mxu0 %v589
      %681 = vmatpush.msra.mxu0 %v588
      %682 = vmatmul.f32.gmra.mxu0 %v552
      %v683 = vpop.f32.mrf.mxu0
      %v684 = vadd.f32 %v655, %v683
      %685 = vmatmul.f32.gmra.mxu0 %v553
      %v686 = vpop.f32.mrf.mxu0
      %v687 = vadd.f32 %v658, %v686
      %688 = vmatmul.f32.gmra.mxu0 %v554
      %v689 = vpop.f32.mrf.mxu0
      %v690 = vadd.f32 %v661, %v689
      %691 = vmatmul.f32.gmra.mxu0 %v555
      %v692 = vpop.f32.mrf.mxu0
      %v693 = vadd.f32 %v664, %v692
      %694 = vdwg.mxu0
      %v695 = vadd.f32 %v684, %v271
      %v696 = vadd.f32 %v687, %v272
      %v697 = vadd.f32 %v690, %v273
      %v698 = vadd.f32 %v693, %v274
      %v699 = vmax.f32 %v695, 0.0
      %v700 = vmax.f32 %v696, 0.0
      %v701 = vmax.f32 %v697, 0.0
      %v702 = vmax.f32 %v698, 0.0
      %703 = vst [vmem:[%s261] sm:$0xff] %v699
      %704 = vst [vmem:[%s261 + $0x8] sm:$0xff] %v700
      %705 = vst [vmem:[%s261 + $0x10] sm:$0xff] %v701
      %706 = vst [vmem:[%s261 + $0x18] sm:$0xff] %v702
      %s707 = smul.u32 4, %s18
      %p708 = scmp.lt.s32.totalorder %s707, 15
      %s709 = scalar_select %p708, %s707, 15
      %s710 = smul.addr %s709, 8
      %s711 = scalar_lea.vmem %s5, %s710
      %s712 = smul.u32 4, %s18
      %p713 = scmp.lt.s32.totalorder %s712, 15
      %s714 = scalar_select %p713, %s712, 15
      %s715 = smul.addr %s714, 2
      %s716 = scalar_lea.vmem %s6, %s715
      // Predicated region
      $region41: #{basic_block_pallas.1} parent=39 // pred_check
        %p717 = pneg %p146
      $region42: #{basic_block_pallas.1} parent=39 // pred_check_branch
        %719 = sbr.rel (%p717) target = $region44
      $region43: #{basic_block_pallas.1} parent=39 // pred_region
        %s720 = smul.u32 4, %s18
      $region44: #{basic_block_pallas.1} parent=39 // pred_fallthru
        _
      // Predicated region
      $region45: #{basic_block_pallas.1} parent=39 // pred_check
        %p721 = pneg %p172
      $region46: #{basic_block_pallas.1} parent=39 // pred_check_branch
        %723 = sbr.rel (%p721) target = $region48
      $region47: #{basic_block_pallas.1} parent=39 // pred_region
        %s724 = smul.u32 4, %s18
      $region48: #{basic_block_pallas.1} parent=39 // pred_fallthru
        _
    $region40: #{basic_block_pallas.1} parent=5 // pred_fallthru
      _
    %p725 = scmp.le.s32.totalorder 2, %s13
    // Predicated region
    $region49: #{basic_block_pallas.1} parent=5 // pred_check
      %p726 = pneg %p725
    $region50: #{basic_block_pallas.1} parent=5 // pred_check_branch
      %728 = sbr.rel (%p726) target = $region52
    $region51: #{basic_block_pallas.1} parent=5 // pred_region
      %s729 = ssub.s32 %s13, 2
      // Predicated region
      $region53: #{basic_block_pallas.1} parent=51 // pred_check
        %p730 = pneg %p152
      $region54: #{basic_block_pallas.1} parent=51 // pred_check_branch
        %732 = sbr.rel (%p730) target = $region56
      $region55: #{basic_block_pallas.1} parent=51 // pred_region
        %s733 = smul.u32 4, %s19
        %p734 = scmp.lt.s32.totalorder %s733, 15
        %s735 = scalar_select %p734, %s733, 15
        %s736 = smul.addr %s735, 8
        %s737 = scalar_lea.vmem %s5, %s736
      $region56: #{basic_block_pallas.1} parent=51 // pred_fallthru
        _
      // Predicated region
      $region57: #{basic_block_pallas.1} parent=51 // pred_check
        %p738 = pneg %p178
      $region58: #{basic_block_pallas.1} parent=51 // pred_check_branch
        %740 = sbr.rel (%p738) target = $region60
      $region59: #{basic_block_pallas.1} parent=51 // pred_region
        %s741 = smul.u32 4, %s19
        %p742 = scmp.lt.s32.totalorder %s741, 15
        %s743 = scalar_select %p742, %s741, 15
        %s744 = smul.addr %s743, 2
        %s745 = scalar_lea.vmem %s6, %s744
      $region60: #{basic_block_pallas.1} parent=51 // pred_fallthru
        _
    $region52: #{basic_block_pallas.1} parent=5 // pred_fallthru
      _
  $region6: #{basic_block_pallas.1} parent=0 // loop_footer
    %s17 = sadd.s32 1, %s13
  $region7: #{basic_block_pallas.1} parent=0 // loop_footer_branch
    %12 = sbr.rel target = $region3
  $region8: #{basic_block_pallas.1} parent=0 // loop_exit
    _

</llo_original>
